<compile_context>
chip_gen: v7x
topology: tpu7x:2x2x1
jax: 0.10.0
libtpu: 0.0.40
codegen_flags: <defaults>
</compile_context>

<pallas_src>
import functools

import jax
import jax.numpy as jnp
from jax import lax
from jax.experimental import pallas as pl


def _fused_norm_gram_kernel(a1_ref, a2_ref, a1n_ref, a2n_ref, ta_ref, tb_ref):
    """Single invocation (no grid): normalize both C3-symmetrized tensors and
    build both double-layer Gram matrices.

    a1_ref : (d, D^3)   flattened C3-symmetrized A1
    a2_ref : (1, D^3)   flattened C3-symmetrized A2
    a1n_ref: (d, D^3)   A1symm / ||A1symm||_F
    a2n_ref: (1, D^3)   A2symm / ||A2symm||_F
    ta_ref : (D^3, D^3) Ta[efg, abc] = sum_m a1n[m, efg] * a1n[m, abc]
    tb_ref : (D^3, D^3) Tb[efg, abc] = a2n[0, efg] * a2n[0, abc]
    (real dtype, so conj == identity)
    """
    a1 = a1_ref[...]
    a2 = a2_ref[...]

    # Frobenius norms (VPU square + XLU reduce + EUP rsqrt).
    inv1 = lax.rsqrt(jnp.sum(a1 * a1))
    inv2 = lax.rsqrt(jnp.sum(a2 * a2))
    a1n = a1 * inv1
    a2n = a2 * inv2
    a1n_ref[...] = a1n
    a2n_ref[...] = a2n

    # Double-layer Gram on the MXU: contract dim 0 of both operands (no
    # materialized transpose).  Normalized operands are fed directly so the
    # result matches the module's "normalize, then outer-product" order.
    dn = (((0,), (0,)), ((), ()))
    ta_ref[...] = lax.dot_general(a1n, a1n, dn, preferred_element_type=jnp.float32)
    tb_ref[...] = lax.dot_general(a2n, a2n, dn, preferred_element_type=jnp.float32)


def _fused_norm_gram(a1_flat, a2_flat):
    """a1_flat: (d, D^3), a2_flat: (1, D^3) float32.

    Returns (a1_norm, a2_norm, Ta_mat, Tb_mat) from one Pallas dispatch with
    full-array blocks (no padding, no grid).
    """
    d, d3 = a1_flat.shape
    return pl.pallas_call(
        _fused_norm_gram_kernel,
        out_shape=(
            jax.ShapeDtypeStruct((d, d3), jnp.float32),
            jax.ShapeDtypeStruct((1, d3), jnp.float32),
            jax.ShapeDtypeStruct((d3, d3), jnp.float32),
            jax.ShapeDtypeStruct((d3, d3), jnp.float32),
        ),
        # No grid / specs: every input and output is a full-array VMEM block
        # (exempt from the (8,128) divisibility rule); total footprint is a
        # few KiB, far under any generation's VMEM limit.
    )(a1_flat, a2_flat)


def _eafbgc_reshape(t_mat, D):
    """(D^3, D^3) with row=(e,f,g), col=(a,b,c)  ->  (D^2, D^2, D^2) in eafbgc order."""
    t6 = t_mat.reshape(D, D, D, D, D, D)             # (e, f, g, a, b, c)
    t6 = jnp.transpose(t6, (0, 3, 1, 4, 2, 5))       # (e, a, f, b, g, c)
    return t6.reshape(D * D, D * D, D * D)


@functools.partial(jax.jit, static_argnames=("d", "D"))
def honeycomb_ipess_forward(A1, A2, d, D):
    """Pallas-backed forward: symmetrize, normalize, build double-layer Ta/Tb."""
    # --- C3 symmetrization: exact transpose-adds (cheap permutation glue) ---
    A1symm = (A1
              + jnp.transpose(A1, (0, 2, 3, 1))
              + jnp.transpose(A1, (0, 3, 1, 2)))     # (d, D, D, D)
    A2symm = (A2
              + jnp.transpose(A2, (1, 2, 0))
              + jnp.transpose(A2, (2, 0, 1)))        # (D, D, D)

    D3 = D * D * D
    a1_flat = A1symm.reshape(d, D3)
    a2_flat = A2symm.reshape(1, D3)

    # --- hot path: one fused, ungridded Pallas dispatch ---
    a1n, a2n, ta_mat, tb_mat = _fused_norm_gram(a1_flat, a2_flat)

    A1symm_n = a1n.reshape(d, D, D, D)               # == final_A1 buffer contents
    A2symm_n = a2n.reshape(D, D, D)                  # == final_A2 buffer contents

    Ta = _eafbgc_reshape(ta_mat, D)                  # (D^2, D^2, D^2)
    Tb = _eafbgc_reshape(tb_mat, D)                  # (D^2, D^2, D^2)

    # TODO(synk): CTMRG_honeycomb_pess + get_energy_pess are not available in the
    #             given module; loss / Mx / My / Mz cannot be computed faithfully.
    return A1symm_n, A2symm_n, Ta, Tb


def _reference(A1, A2, d, D):
    """Pure-JAX reference of the same computation, for a correctness check."""
    A1symm = A1 + jnp.transpose(A1, (0, 2, 3, 1)) + jnp.transpose(A1, (0, 3, 1, 2))
    A2symm = A2 + jnp.transpose(A2, (1, 2, 0)) + jnp.transpose(A2, (2, 0, 1))
    A1symm = A1symm / jnp.linalg.norm(A1symm)
    A2symm = A2symm / jnp.linalg.norm(A2symm)
    Ta = jnp.einsum("mefg,mabc->eafbgc", A1symm, jnp.conj(A1symm)).reshape(D**2, D**2, D**2)
    Tb = jnp.einsum("efg,abc->eafbgc", A2symm, jnp.conj(A2symm)).reshape(D**2, D**2, D**2)
    return A1symm, A2symm, Ta, Tb


if __name__ == "__main__":
    # small shapes consistent with the module: d = physical dim, D = bond dim
    d, D = 2, 3

    key = jax.random.PRNGKey(0)
    k1, k2 = jax.random.split(key, 2)

    # deterministic "parameters" (torch.rand -> uniform[0,1), then normalized)
    A1 = jax.random.uniform(k1, (d, D, D, D), dtype=jnp.float32)
    A1 = A1 / jnp.linalg.norm(A1)
    A2 = jax.random.uniform(k2, (D, D, D), dtype=jnp.float32)
    A2 = A2 / jnp.linalg.norm(A2)
    # (H, Mpx, Mpy, Mpz, chi only feed the external CTMRG/energy routines and are
    #  unused by the reproducible part of forward.)

    outs = honeycomb_ipess_forward(A1, A2, d, D)
    outs = jax.block_until_ready(outs)

    refs = _reference(A1, A2, d, D)
    for o, r in zip(outs, refs):
        assert o.shape == r.shape and o.dtype == r.dtype
        assert jnp.allclose(o, r, atol=1e-5, rtol=1e-5), "mismatch vs reference"

    print("KERNEL_OK")
</pallas_src>

<mosaic_0001>
module attributes {stable_mosaic.version = 11 : i64} {
  func.func @_fused_norm_gram_kernel(%arg0: memref<2x27xf32, #tpu.memory_space<vmem>>, %arg1: memref<1x27xf32, #tpu.memory_space<vmem>>, %arg2: memref<2x27xf32, #tpu.memory_space<vmem>>, %arg3: memref<1x27xf32, #tpu.memory_space<vmem>>, %arg4: memref<27x27xf32, #tpu.memory_space<vmem>>, %arg5: memref<27x27xf32, #tpu.memory_space<vmem>>) attributes {dimension_semantics = [], scalar_prefetch = 0 : i64, scratch_operands = 0 : i64, tpu.core_type = #tpu.core_type<tc>} {
    %c0 = arith.constant 0 : index
    %c0_0 = arith.constant 0 : index
    %0 = vector.load %arg0[%c0, %c0_0] : memref<2x27xf32, #tpu.memory_space<vmem>>, vector<2x27xf32>
    %c0_1 = arith.constant 0 : index
    %c0_2 = arith.constant 0 : index
    %1 = vector.load %arg1[%c0_1, %c0_2] : memref<1x27xf32, #tpu.memory_space<vmem>>, vector<1x27xf32>
    %2 = arith.mulf %0, %0 : vector<2x27xf32>
    %3 = vector.shape_cast %2 : vector<2x27xf32> to vector<1x2x27xf32>
    %cst = arith.constant dense<0.000000e+00> : vector<1xf32>
    %4 = vector.multi_reduction <add>, %3, %cst [1, 2] : vector<1x2x27xf32> to vector<1xf32>
    %5 = vector.shape_cast %4 : vector<1xf32> to vector<1x1x1xf32>
    %6 = vector.extract %5[0, 0, 0] : f32 from vector<1x1x1xf32>
    %7 = math.rsqrt %6 : f32
    %8 = arith.mulf %1, %1 : vector<1x27xf32>
    %9 = vector.shape_cast %8 : vector<1x27xf32> to vector<1x1x27xf32>
    %cst_3 = arith.constant dense<0.000000e+00> : vector<1xf32>
    %10 = vector.multi_reduction <add>, %9, %cst_3 [1, 2] : vector<1x1x27xf32> to vector<1xf32>
    %11 = vector.shape_cast %10 : vector<1xf32> to vector<1x1x1xf32>
    %12 = vector.extract %11[0, 0, 0] : f32 from vector<1x1x1xf32>
    %13 = math.rsqrt %12 : f32
    %14 = vector.broadcast %7 : f32 to vector<2x27xf32>
    %15 = arith.mulf %0, %14 : vector<2x27xf32>
    %16 = vector.broadcast %13 : f32 to vector<1x27xf32>
    %17 = arith.mulf %1, %16 : vector<1x27xf32>
    %c0_4 = arith.constant 0 : index
    %c0_5 = arith.constant 0 : index
    %18 = vector.load %arg2[%c0_4, %c0_5] : memref<2x27xf32, #tpu.memory_space<vmem>>, vector<2x27xf32>
    tpu.vector_store %arg2[%c0_4, %c0_5], %15 {strides = array<i32>} : memref<2x27xf32, #tpu.memory_space<vmem>>, vector<2x27xf32>,
    %c0_6 = arith.constant 0 : index
    %c0_7 = arith.constant 0 : index
    %19 = vector.load %arg3[%c0_6, %c0_7] : memref<1x27xf32, #tpu.memory_space<vmem>>, vector<1x27xf32>
    tpu.vector_store %arg3[%c0_6, %c0_7], %17 {strides = array<i32>} : memref<1x27xf32, #tpu.memory_space<vmem>>, vector<1x27xf32>,
    %cst_8 = arith.constant dense<0.000000e+00> : vector<27x27xf32>
    %20 = tpu.matmul %15, %15, %cst_8 {dimension_numbers = #tpu.dot_dimension_numbers<[0], [0], [1], [1], [0, 1, 1, 1], [], []>} : vector<2x27xf32>, vector<2x27xf32>, vector<27x27xf32> -> vector<27x27xf32>
    %c0_9 = arith.constant 0 : index
    %c0_10 = arith.constant 0 : index
    %21 = vector.load %arg4[%c0_9, %c0_10] : memref<27x27xf32, #tpu.memory_space<vmem>>, vector<27x27xf32>
    tpu.vector_store %arg4[%c0_9, %c0_10], %20 {strides = array<i32>} : memref<27x27xf32, #tpu.memory_space<vmem>>, vector<27x27xf32>,
    %cst_11 = arith.constant dense<0.000000e+00> : vector<27x27xf32>
    %22 = tpu.matmul %17, %17, %cst_11 {dimension_numbers = #tpu.dot_dimension_numbers<[0], [0], [1], [1], [0, 1, 1, 1], [], []>} : vector<1x27xf32>, vector<1x27xf32>, vector<27x27xf32> -> vector<27x27xf32>
    %c0_12 = arith.constant 0 : index
    %c0_13 = arith.constant 0 : index
    %23 = vector.load %arg5[%c0_12, %c0_13] : memref<27x27xf32, #tpu.memory_space<vmem>>, vector<27x27xf32>
    tpu.vector_store %arg5[%c0_12, %c0_13], %22 {strides = array<i32>} : memref<27x27xf32, #tpu.memory_space<vmem>>, vector<27x27xf32>,
    return
  }
}

</mosaic_0001>

<llo_original>
// kernel: honeycomb_ipess_forward.1
$region0: #{honeycomb_ipess_forward.1}
  #allocation0 [shape = 'u32[]', space=smem, size = 0x4, offset = 0x4, fixed_abs, tag = 'smem constant byte address 0x4 - core index']
  #allocation1 [shape = 'u32[144,128]{1,0:T(1,128)}', space=vmem, size = 0x12000, scoped, tag = 'internal scratch']
  %s0 = inlined_call_operand.vmem [shape: f32[2,27], index: 0, kind: input, shape index: {}]
  %s1 = inlined_call_operand.vmem [shape: f32[1,27], index: 1, kind: input, shape index: {}]
  %s2 = inlined_call_operand.vmem [shape: f32[2,27], index: 2, kind: output, shape index: {0}]
  %s3 = inlined_call_operand.vmem [shape: f32[1,27], index: 3, kind: output, shape index: {1}]
  %s4 = inlined_call_operand.vmem [shape: f32[27,27], index: 4, kind: output, shape index: {2}]
  %s5 = inlined_call_operand.vmem [shape: f32[27,27], index: 5, kind: output, shape index: {3}]
  %6 = xla_tuple %s2, %s3, %s4, %s5
  %s7 = sld [smem:[#allocation0]]
  $region42: #{honeycomb_ipess_forward.1} parent=0
    _
  %s9 = ssub.s32 1, %s7
  %s10 = scalar_select 0, %s9, %s7
  // Predicated region
  $region2: #{honeycomb_ipess_forward.1} parent=0 // pred_check
    _
  $region3: #{honeycomb_ipess_forward.1} parent=0 // pred_check_branch
    %12 = sbr.rel (0) target = $region5
  $region4: #{honeycomb_ipess_forward.1} parent=0 // pred_region
    _
  $region5: #{honeycomb_ipess_forward.1} parent=0 // pred_fallthru
    _
  // Predicated region
  $region6: #{honeycomb_ipess_forward.1} parent=0 // pred_check
    _
  $region7: #{honeycomb_ipess_forward.1} parent=0 // pred_check_branch
    %14 = sbr.rel (0) target = $region9
  $region8: #{honeycomb_ipess_forward.1} parent=0 // pred_region
    _
  $region9: #{honeycomb_ipess_forward.1} parent=0 // pred_fallthru
    _
  %v15 = vld [vmem:[%s0] sm:$0x3]
  %v16 = vld [vmem:[%s1] sm:$0x1]
  %v17 = vmul.f32 %v15, %v15
  %vm18 = vcmask 214016
  %v19 = vsel %vm18, %v17, 0.0
  %20 = vadd.xlane.f32.xlu0 %v19
  %v21 = vpop.xlane.xlu0 %20
  %v22 = vrot.slane %v21, 4
  %v23 = vadd.f32 %v21, %v22
  %v24 = vrot.slane %v23, 2
  %v25 = vadd.f32 %v23, %v24
  %v26 = vrot.slane %v25, 1
  %v27 = vadd.f32 %v25, %v26
  %s28 = vtos %v27
  %v29 = vstv %s28
  %v30 = vrsqrt.pop %v29
  %s31 = vtos %v30
  %v32 = vmul.f32 %v16, %v16
  %vm33 = vcmask 212992
  %v34 = vsel %vm33, %v32, 0.0
  %35 = vadd.xlane.f32.xlu0 %v34
  %v36 = vpop.xlane.xlu0 %35
  %v37 = vrot.slane %v36, 4
  %v38 = vadd.f32 %v36, %v37
  %v39 = vrot.slane %v38, 2
  %v40 = vadd.f32 %v38, %v39
  %v41 = vrot.slane %v40, 1
  %v42 = vadd.f32 %v40, %v41
  %s43 = vtos %v42
  %v44 = vstv %s43
  %v45 = vrsqrt.pop %v44
  %s46 = vtos %v45
  %v47 = vstv %s31
  %v48 = vmul.f32 %v15, %v47
  %v49 = vstv %s46
  %v50 = vmul.f32 %v16, %v49
  %51 = vst.msk [vmem:[%s2] sm:$0x3] %vm18, %v48
  %52 = vst.msk [vmem:[%s3] sm:$0x1] %vm33, %v50
  %53 = vxpose.xlu0.b32.start [1/16] %v48, 128
  %54 = vxpose.xlu0.b32.cont [2/16] 0.0, 128
  %55 = vxpose.xlu0.b32.cont [3/16] 0.0, 128
  %56 = vxpose.xlu0.b32.cont [4/16] 0.0, 128
  %57 = vxpose.xlu0.b32.cont [5/16] 0.0, 128
  %58 = vxpose.xlu0.b32.cont [6/16] 0.0, 128
  %59 = vxpose.xlu0.b32.cont [7/16] 0.0, 128
  %60 = vxpose.xlu0.b32.cont [8/16] 0.0, 128
  %61 = vxpose.xlu0.b32.cont [9/16] 0.0, 128
  %62 = vxpose.xlu0.b32.cont [10/16] 0.0, 128
  %63 = vxpose.xlu0.b32.cont [11/16] 0.0, 128
  %64 = vxpose.xlu0.b32.cont [12/16] 0.0, 128
  %65 = vxpose.xlu0.b32.cont [13/16] 0.0, 128
  %66 = vxpose.xlu0.b32.cont [14/16] 0.0, 128
  %67 = vxpose.xlu0.b32.cont [15/16] 0.0, 128
  %68 = vxpose.xlu0.b32.end [16/16] 0.0, 128
  %v69 = vpop.trf.xlu0
  %v70 = vpop.trf.xlu0
  %v71 = vpop.trf.xlu0
  %v72 = vpop.trf.xlu0
  %v73 = vpop.trf.xlu0
  %v74 = vpop.trf.xlu0
  %v75 = vpop.trf.xlu0
  %v76 = vpop.trf.xlu0
  %v77 = vpop.trf.xlu0
  %v78 = vpop.trf.xlu0
  %v79 = vpop.trf.xlu0
  %v80 = vpop.trf.xlu0
  %v81 = vpop.trf.xlu0
  %v82 = vpop.trf.xlu0
  %v83 = vpop.trf.xlu0
  %v84 = vpop.trf.xlu0
  %vm85 = vcmask 15360
  %v87 = vsel %vm85, %v69, 0
  %v90 = vsel %vm85, %v70, 0
  %v93 = vsel %vm85, %v71, 0
  %v96 = vsel %vm85, %v72, 0
  %vm98 = vcmask 1041408
  %v100 = vsel %vm98, %v48, 0
  %102 = vmatprep.subr.mxu0 0.0
  %103 = vmatpush1.msra.mxu0 %v100
  %104 = vmatprep.subr.mxu0 0.0
  %105 = vmatpush1.msra.mxu0 0.0
  %106 = vmatprep.subr.mxu0 0.0
  %107 = vmatpush1.msra.mxu0 0.0
  %108 = vmatprep.subr.mxu0 0.0
  %109 = vmatpush1.msra.mxu0 0.0
  %110 = vmatprep.subr.mxu0 0.0
  %111 = vmatpush1.msra.mxu0 0.0
  %112 = vmatprep.subr.mxu0 0.0
  %113 = vmatpush1.msra.mxu0 0.0
  %114 = vmatprep.subr.mxu0 0.0
  %115 = vmatpush1.msra.mxu0 0.0
  %116 = vmatprep.subr.mxu0 0.0
  %117 = vmatpush1.msra.mxu0 0.0
  %118 = vmatprep.subr.mxu0 0.0
  %119 = vmatpush1.msra.mxu0 0.0
  %120 = vmatprep.subr.mxu0 0.0
  %121 = vmatpush1.msra.mxu0 0.0
  %122 = vmatprep.subr.mxu0 0.0
  %123 = vmatpush1.msra.mxu0 0.0
  %124 = vmatprep.subr.mxu0 0.0
  %125 = vmatpush1.msra.mxu0 0.0
  %126 = vmatprep.subr.mxu0 0.0
  %127 = vmatpush1.msra.mxu0 0.0
  %128 = vmatprep.subr.mxu0 0.0
  %129 = vmatpush1.msra.mxu0 0.0
  %130 = vmatprep.subr.mxu0 0.0
  %131 = vmatpush1.msra.mxu0 0.0
  %132 = vmatprep.subr.mxu0 0.0
  %133 = vmatpush1.msra.mxu0 0.0
  %134 = vmatprep.subr.mxu0 0.0
  %135 = vmatpush1.msra.mxu0 0.0
  %136 = vmatprep.subr.mxu0 0.0
  %137 = vmatpush1.msra.mxu0 0.0
  %138 = vmatprep.subr.mxu0 0.0
  %139 = vmatpush1.msra.mxu0 0.0
  %140 = vmatprep.subr.mxu0 0.0
  %141 = vmatpush1.msra.mxu0 0.0
  %142 = vmatprep.subr.mxu0 0.0
  %143 = vmatpush1.msra.mxu0 0.0
  %144 = vmatprep.subr.mxu0 0.0
  %145 = vmatpush1.msra.mxu0 0.0
  %146 = vmatprep.subr.mxu0 0.0
  %147 = vmatpush1.msra.mxu0 0.0
  %148 = vmatprep.subr.mxu0 0.0
  %149 = vmatpush1.msra.mxu0 0.0
  %150 = vmatprep.subr.mxu0 0.0
  %151 = vmatpush1.msra.mxu0 0.0
  %152 = vmatprep.subr.mxu0 0.0
  %153 = vmatpush1.msra.mxu0 0.0
  %154 = vmatprep.subr.mxu0 0.0
  %155 = vmatpush1.msra.mxu0 0.0
  %156 = vmatprep.subr.mxu0 0.0
  %157 = vmatpush1.msra.mxu0 0.0
  %158 = vmatprep.subr.mxu0 0.0
  %159 = vmatpush1.msra.mxu0 0.0
  %160 = vmatprep.subr.mxu0 0.0
  %161 = vmatpush1.msra.mxu0 0.0
  %162 = vmatprep.subr.mxu0 0.0
  %163 = vmatpush1.msra.mxu0 0.0
  %164 = vmatprep.subr.mxu0 0.0
  %165 = vmatpush1.msra.mxu0 0.0
  %166 = vmatprep.mubr.f32.mxu0 0.0
  %167 = vmatmul.mubr.f32.gmra.mrb[0].mxu0 %v87
  %v168 = vpop.f32.mrb[0].mxu0
  %v169 = vadd.f32 0.0, %v168
  %v170 = vpop.f32.mrb[0].mxu0
  %171 = vmatprep.mubr.f32.mxu0 0.0
  %172 = vmatmul.mubr.f32.gmra.mrb[0].mxu0 %v90
  %v173 = vpop.f32.mrb[0].mxu0
  %v174 = vadd.f32 0.0, %v173
  %v175 = vpop.f32.mrb[0].mxu0
  %176 = vmatprep.mubr.f32.mxu0 0.0
  %177 = vmatmul.mubr.f32.gmra.mrb[0].mxu0 %v93
  %v178 = vpop.f32.mrb[0].mxu0
  %v179 = vadd.f32 0.0, %v178
  %v180 = vpop.f32.mrb[0].mxu0
  %181 = vmatprep.mubr.f32.mxu0 0.0
  %182 = vmatmul.mubr.f32.gmra.mrb[0].mxu0 %v96
  %v183 = vpop.f32.mrb[0].mxu0
  %v184 = vadd.f32 0.0, %v183
  %v185 = vpop.f32.mrb[0].mxu0
  %186 = vdwg.mxu0
  %vm187 = vcmask 220160
  %188 = vst.msk [vmem:[%s4] sm:$0xff] %vm187, %v169
  %189 = vst.msk [vmem:[%s4 + $0x8] sm:$0xff] %vm187, %v174
  %190 = vst.msk [vmem:[%s4 + $0x10] sm:$0xff] %vm187, %v179
  %vm191 = vcmask 215040
  %192 = vst.msk [vmem:[%s4 + $0x18] sm:$0x7] %vm191, %v184
  %193 = vxpose.xlu0.b32.start [1/16] %v50, 128
  %194 = vxpose.xlu0.b32.cont [2/16] 0.0, 128
  %195 = vxpose.xlu0.b32.cont [3/16] 0.0, 128
  %196 = vxpose.xlu0.b32.cont [4/16] 0.0, 128
  %197 = vxpose.xlu0.b32.cont [5/16] 0.0, 128
  %198 = vxpose.xlu0.b32.cont [6/16] 0.0, 128
  %199 = vxpose.xlu0.b32.cont [7/16] 0.0, 128
  %200 = vxpose.xlu0.b32.cont [8/16] 0.0, 128
  %201 = vxpose.xlu0.b32.cont [9/16] 0.0, 128
  %202 = vxpose.xlu0.b32.cont [10/16] 0.0, 128
  %203 = vxpose.xlu0.b32.cont [11/16] 0.0, 128
  %204 = vxpose.xlu0.b32.cont [12/16] 0.0, 128
  %205 = vxpose.xlu0.b32.cont [13/16] 0.0, 128
  %206 = vxpose.xlu0.b32.cont [14/16] 0.0, 128
  %207 = vxpose.xlu0.b32.cont [15/16] 0.0, 128
  %208 = vxpose.xlu0.b32.end [16/16] 0.0, 128
  %v209 = vpop.trf.xlu0
  %v210 = vpop.trf.xlu0
  %v211 = vpop.trf.xlu0
  %v212 = vpop.trf.xlu0
  %v213 = vpop.trf.xlu0
  %v214 = vpop.trf.xlu0
  %v215 = vpop.trf.xlu0
  %v216 = vpop.trf.xlu0
  %v217 = vpop.trf.xlu0
  %v218 = vpop.trf.xlu0
  %v219 = vpop.trf.xlu0
  %v220 = vpop.trf.xlu0
  %v221 = vpop.trf.xlu0
  %v222 = vpop.trf.xlu0
  %v223 = vpop.trf.xlu0
  %v224 = vpop.trf.xlu0
  %vm225 = vcmask 7168
  %v227 = vsel %vm225, %v209, 0
  %v230 = vsel %vm225, %v210, 0
  %v233 = vsel %vm225, %v211, 0
  %v236 = vsel %vm225, %v212, 0
  %vm238 = vcmask 1040384
  %v240 = vsel %vm238, %v50, 0
  %242 = vmatprep.subr.mxu0 0.0
  %243 = vmatpush1.msra.mxu0 %v240
  %244 = vmatprep.subr.mxu0 0.0
  %245 = vmatpush1.msra.mxu0 0.0
  %246 = vmatprep.subr.mxu0 0.0
  %247 = vmatpush1.msra.mxu0 0.0
  %248 = vmatprep.subr.mxu0 0.0
  %249 = vmatpush1.msra.mxu0 0.0
  %250 = vmatprep.subr.mxu0 0.0
  %251 = vmatpush1.msra.mxu0 0.0
  %252 = vmatprep.subr.mxu0 0.0
  %253 = vmatpush1.msra.mxu0 0.0
  %254 = vmatprep.subr.mxu0 0.0
  %255 = vmatpush1.msra.mxu0 0.0
  %256 = vmatprep.subr.mxu0 0.0
  %257 = vmatpush1.msra.mxu0 0.0
  %258 = vmatprep.subr.mxu0 0.0
  %259 = vmatpush1.msra.mxu0 0.0
  %260 = vmatprep.subr.mxu0 0.0
  %261 = vmatpush1.msra.mxu0 0.0
  %262 = vmatprep.subr.mxu0 0.0
  %263 = vmatpush1.msra.mxu0 0.0
  %264 = vmatprep.subr.mxu0 0.0
  %265 = vmatpush1.msra.mxu0 0.0
  %266 = vmatprep.subr.mxu0 0.0
  %267 = vmatpush1.msra.mxu0 0.0
  %268 = vmatprep.subr.mxu0 0.0
  %269 = vmatpush1.msra.mxu0 0.0
  %270 = vmatprep.subr.mxu0 0.0
  %271 = vmatpush1.msra.mxu0 0.0
  %272 = vmatprep.subr.mxu0 0.0
  %273 = vmatpush1.msra.mxu0 0.0
  %274 = vmatprep.subr.mxu0 0.0
  %275 = vmatpush1.msra.mxu0 0.0
  %276 = vmatprep.subr.mxu0 0.0
  %277 = vmatpush1.msra.mxu0 0.0
  %278 = vmatprep.subr.mxu0 0.0
  %279 = vmatpush1.msra.mxu0 0.0
  %280 = vmatprep.subr.mxu0 0.0
  %281 = vmatpush1.msra.mxu0 0.0
  %282 = vmatprep.subr.mxu0 0.0
  %283 = vmatpush1.msra.mxu0 0.0
  %284 = vmatprep.subr.mxu0 0.0
  %285 = vmatpush1.msra.mxu0 0.0
  %286 = vmatprep.subr.mxu0 0.0
  %287 = vmatpush1.msra.mxu0 0.0
  %288 = vmatprep.subr.mxu0 0.0
  %289 = vmatpush1.msra.mxu0 0.0
  %290 = vmatprep.subr.mxu0 0.0
  %291 = vmatpush1.msra.mxu0 0.0
  %292 = vmatprep.subr.mxu0 0.0
  %293 = vmatpush1.msra.mxu0 0.0
  %294 = vmatprep.subr.mxu0 0.0
  %295 = vmatpush1.msra.mxu0 0.0
  %296 = vmatprep.subr.mxu0 0.0
  %297 = vmatpush1.msra.mxu0 0.0
  %298 = vmatprep.subr.mxu0 0.0
  %299 = vmatpush1.msra.mxu0 0.0
  %300 = vmatprep.subr.mxu0 0.0
  %301 = vmatpush1.msra.mxu0 0.0
  %302 = vmatprep.subr.mxu0 0.0
  %303 = vmatpush1.msra.mxu0 0.0
  %304 = vmatprep.subr.mxu0 0.0
  %305 = vmatpush1.msra.mxu0 0.0
  %306 = vmatprep.mubr.f32.mxu0 0.0
  %307 = vmatmul.mubr.f32.gmra.mrb[0].mxu0 %v227
  %v308 = vpop.f32.mrb[0].mxu0
  %v309 = vadd.f32 0.0, %v308
  %v310 = vpop.f32.mrb[0].mxu0
  %311 = vmatprep.mubr.f32.mxu0 0.0
  %312 = vmatmul.mubr.f32.gmra.mrb[0].mxu0 %v230
  %v313 = vpop.f32.mrb[0].mxu0
  %v314 = vadd.f32 0.0, %v313
  %v315 = vpop.f32.mrb[0].mxu0
  %316 = vmatprep.mubr.f32.mxu0 0.0
  %317 = vmatmul.mubr.f32.gmra.mrb[0].mxu0 %v233
  %v318 = vpop.f32.mrb[0].mxu0
  %v319 = vadd.f32 0.0, %v318
  %v320 = vpop.f32.mrb[0].mxu0
  %321 = vmatprep.mubr.f32.mxu0 0.0
  %322 = vmatmul.mubr.f32.gmra.mrb[0].mxu0 %v236
  %v323 = vpop.f32.mrb[0].mxu0
  %v324 = vadd.f32 0.0, %v323
  %v325 = vpop.f32.mrb[0].mxu0
  %326 = vdwg.mxu0
  %327 = vst.msk [vmem:[%s5] sm:$0xff] %vm187, %v309
  %328 = vst.msk [vmem:[%s5 + $0x8] sm:$0xff] %vm187, %v314
  %329 = vst.msk [vmem:[%s5 + $0x10] sm:$0xff] %vm187, %v319
  %330 = vst.msk [vmem:[%s5 + $0x18] sm:$0x7] %vm191, %v324
  // Predicated region
  $region10: #{honeycomb_ipess_forward.1} parent=0 // pred_check
    _
  $region11: #{honeycomb_ipess_forward.1} parent=0 // pred_check_branch
    %332 = sbr.rel (0) target = $region13
  $region12: #{honeycomb_ipess_forward.1} parent=0 // pred_region
    _
  $region13: #{honeycomb_ipess_forward.1} parent=0 // pred_fallthru
    _
  // Predicated region
  $region14: #{honeycomb_ipess_forward.1} parent=0 // pred_check
    _
  $region15: #{honeycomb_ipess_forward.1} parent=0 // pred_check_branch
    %334 = sbr.rel (0) target = $region17
  $region16: #{honeycomb_ipess_forward.1} parent=0 // pred_region
    _
  $region17: #{honeycomb_ipess_forward.1} parent=0 // pred_fallthru
    _
  // Predicated region
  $region18: #{honeycomb_ipess_forward.1} parent=0 // pred_check
    _
  $region19: #{honeycomb_ipess_forward.1} parent=0 // pred_check_branch
    %336 = sbr.rel (0) target = $region21
  $region20: #{honeycomb_ipess_forward.1} parent=0 // pred_region
    _
  $region21: #{honeycomb_ipess_forward.1} parent=0 // pred_fallthru
    _
  // Predicated region
  $region22: #{honeycomb_ipess_forward.1} parent=0 // pred_check
    _
  $region23: #{honeycomb_ipess_forward.1} parent=0 // pred_check_branch
    %338 = sbr.rel (0) target = $region25
  $region24: #{honeycomb_ipess_forward.1} parent=0 // pred_region
    _
  $region25: #{honeycomb_ipess_forward.1} parent=0 // pred_fallthru
    _
  // Predicated region
  $region26: #{honeycomb_ipess_forward.1} parent=0 // pred_check
    _
  $region27: #{honeycomb_ipess_forward.1} parent=0 // pred_check_branch
    %340 = sbr.rel (0) target = $region29
  $region28: #{honeycomb_ipess_forward.1} parent=0 // pred_region
    _
  $region29: #{honeycomb_ipess_forward.1} parent=0 // pred_fallthru
    _
  // Predicated region
  $region30: #{honeycomb_ipess_forward.1} parent=0 // pred_check
    _
  $region31: #{honeycomb_ipess_forward.1} parent=0 // pred_check_branch
    %342 = sbr.rel (0) target = $region33
  $region32: #{honeycomb_ipess_forward.1} parent=0 // pred_region
    _
  $region33: #{honeycomb_ipess_forward.1} parent=0 // pred_fallthru
    _
  // Predicated region
  $region34: #{honeycomb_ipess_forward.1} parent=0 // pred_check
    _
  $region35: #{honeycomb_ipess_forward.1} parent=0 // pred_check_branch
    %344 = sbr.rel (0) target = $region37
  $region36: #{honeycomb_ipess_forward.1} parent=0 // pred_region
    _
  $region37: #{honeycomb_ipess_forward.1} parent=0 // pred_fallthru
    _
  // Predicated region
  $region38: #{honeycomb_ipess_forward.1} parent=0 // pred_check
    _
  $region39: #{honeycomb_ipess_forward.1} parent=0 // pred_check_branch
    %346 = sbr.rel (0) target = $region41
  $region40: #{honeycomb_ipess_forward.1} parent=0 // pred_region
    _
  $region41: #{honeycomb_ipess_forward.1} parent=0 // pred_fallthru
    _

</llo_original>
